<compile_context>
chip_gen: v7x
topology: tpu7x:2x2x1
jax: 0.10.0
libtpu: 0.0.40
codegen_flags: <defaults>
</compile_context>

<pallas_src>
import jax
import jax.numpy as jnp
from jax.experimental import pallas as pl
from jax.experimental.pallas import tpu as pltpu


def _round_up(x, m):
    return ((x + m - 1) // m) * m


def _make_dice_kernel(n_classes, apply_softmax, mask_pad):
    """Build the per-tile reduction kernel (static config baked in)."""
    C = n_classes

    def kernel(x_ref, t_ref, out_ref, int_acc, z_acc, y_acc):
        ti = pl.program_id(1)

        @pl.when(ti == 0)
        def _init():
            int_acc[...] = jnp.zeros_like(int_acc)
            z_acc[...] = jnp.zeros_like(z_acc)
            y_acc[...] = jnp.zeros_like(y_acc)

        tgt = t_ref[...]                                   # (R, 128) signed int
        # C per-class (R, 128) slabs, upcast to f32 at the load site.
        slabs = [x_ref[c].astype(jnp.float32) for c in range(C)]

        if apply_softmax:
            m = slabs[0]
            for c in range(1, C):
                m = jnp.maximum(m, slabs[c])               # VPU, across slabs
            es = [jnp.exp(s - m) for s in slabs]           # EUP
            tot = es[0]
            for c in range(1, C):
                tot = tot + es[c]
            inv = pl.reciprocal(tot, approx=True)          # EUP slot, cheap
            inv = inv * (2.0 - tot * inv)                  # Newton step -> f32 acc.
            slabs = [e * inv for e in es]
            if mask_pad:
                # padded columns (all-zero scores) would become 1/C after
                # softmax and pollute z_sum; labels are padded with -1.
                valid = tgt >= 0
                slabs = [jnp.where(valid, s, 0.0) for s in slabs]

        int_rows, z_rows, y_rows = [], [], []
        for c in range(C):
            s = slabs[c]
            hit = tgt == c                                 # (R, 128) bool
            int_rows.append(
                jnp.sum(jnp.where(hit, s, 0.0), axis=0, keepdims=True))
            z_rows.append(jnp.sum(s * s, axis=0, keepdims=True))
            y_rows.append(
                jnp.sum(jnp.where(hit, 1.0, 0.0), axis=0, keepdims=True))

        # Lane-partial accumulation: only the sublane/row axis is collapsed per
        # step; the cross-lane reduce runs once per batch element (finalize).
        int_acc[...] += jnp.concatenate(int_rows, axis=0)   # (C, 128)
        z_acc[...] += jnp.concatenate(z_rows, axis=0)
        y_acc[...] += jnp.concatenate(y_rows, axis=0)

        @pl.when(ti == pl.num_programs(1) - 1)
        def _finalize():
            out_ref[:, 0:1] = jnp.sum(int_acc[...], axis=1, keepdims=True)
            out_ref[:, 1:2] = jnp.sum(z_acc[...], axis=1, keepdims=True)
            out_ref[:, 2:3] = jnp.sum(y_acc[...], axis=1, keepdims=True)

    return kernel


def dice_loss(inputs, target, n_classes, weight=None, softmax=False):
    """Forward pass of DiceLoss.

    inputs: (N, C, H, W) float scores, target: (N, H, W) integer label map.
    Matches the PyTorch DiceLoss.forward semantics.
    """
    N, C, H, W = inputs.shape
    assert C == n_classes, "predict & target channel count mismatch"
    HW = H * W

    # --- tile selection: sublane-dense (rows, 128) spatial layout, row tile a
    # multiple of 32 (covers f32 / bf16 / int8 tiling).  Sized so the real
    # double-buffered score + label block footprint stays under ~24 MiB (safe
    # on v7x's 64 MiB physical VMEM, far under v5e/v6e's 128 MiB) while giving
    # multi-MiB DMAs per grid step.
    score_bytes = inputs.dtype.itemsize
    bytes_per_row = 128 * (C * score_bytes + 4)            # scores + int32 labels
    block_budget = 24 * 1024 * 1024                        # double-buffered blocks
    rows_cap = max(32, ((block_budget // (2 * bytes_per_row)) // 32) * 32)

    rows = pl.cdiv(HW, 128)
    num_tiles = pl.cdiv(rows, rows_cap)
    tile_rows = _round_up(pl.cdiv(rows, num_tiles), 32)
    rows_padded = tile_rows * num_tiles
    HWp = rows_padded * 128

    # --- layout: free reshapes, no transpose, no dtype-widening HBM pass.
    x = inputs.reshape(N, C, HW)
    t = target.reshape(N, HW)
    if not jnp.issubdtype(t.dtype, jnp.signedinteger):
        t = t.astype(jnp.int32)
    pad = HWp - HW
    if pad:
        x = jnp.pad(x, ((0, 0), (0, 0), (0, pad)))                  # scores pad 0
        t = jnp.pad(t, ((0, 0), (0, pad)), constant_values=-1)      # label sentinel
    x = x.reshape(N, C, rows_padded, 128)
    t = t.reshape(N, rows_padded, 128)

    kernel = _make_dice_kernel(n_classes, apply_softmax=softmax,
                               mask_pad=(pad > 0 and softmax))

    flops = (8 if softmax else 6) * N * C * HWp
    transcendentals = N * C * HWp if softmax else 0
    bytes_accessed = (N * C * HWp * score_bytes + N * HWp * t.dtype.itemsize
                      + N * C * 12)

    partials = pl.pallas_call(
        kernel,
        out_shape=jax.ShapeDtypeStruct((N, C, 3), jnp.float32),
        grid_spec=pltpu.PrefetchScalarGridSpec(
            num_scalar_prefetch=0,
            grid=(N, num_tiles),
            in_specs=[
                pl.BlockSpec((None, C, tile_rows, 128),
                             lambda n, ti: (n, 0, ti, 0)),           # scores
                pl.BlockSpec((None, tile_rows, 128),
                             lambda n, ti: (n, ti, 0)),              # labels
            ],
            out_specs=pl.BlockSpec((None, C, 3), lambda n, ti: (n, 0, 0)),
            scratch_shapes=[
                pltpu.VMEM((C, 128), jnp.float32),   # intersect lane-partials
                pltpu.VMEM((C, 128), jnp.float32),   # z_sum lane-partials
                pltpu.VMEM((C, 128), jnp.float32),   # y_sum lane-partials
            ],
        ),
        compiler_params=pltpu.CompilerParams(
            dimension_semantics=("parallel", "arbitrary"),
            vmem_limit_bytes=32 * 1024 * 1024),
        cost_estimate=pl.CostEstimate(flops=flops,
                                      transcendentals=transcendentals,
                                      bytes_accessed=bytes_accessed),
    )(x, t)

    sums = jnp.sum(partials, axis=0)          # (C, 3) per-class totals

    if weight is None:
        weight = jnp.ones((n_classes,), jnp.float32)
    else:
        weight = jnp.asarray(weight, jnp.float32)

    smooth = 1e-5
    intersect = sums[:, 0]
    z_sum = sums[:, 1]
    y_sum = sums[:, 2]
    dice = 1.0 - (2.0 * intersect + smooth) / (z_sum + y_sum + smooth)
    loss = jnp.sum(dice * weight) / n_classes
    return loss


def _dice_loss_ref(inputs, target, n_classes, weight=None, softmax=False):
    """Pure-JAX reference matching the PyTorch module (for validation)."""
    if softmax:
        inputs = jax.nn.softmax(inputs.astype(jnp.float32), axis=1)
    onehot = (target[:, None, :, :].astype(jnp.int32)
              == jnp.arange(n_classes, dtype=jnp.int32)[None, :, None, None]
              ).astype(jnp.float32)
    if weight is None:
        weight = jnp.ones((n_classes,), jnp.float32)
    else:
        weight = jnp.asarray(weight, jnp.float32)
    smooth = 1e-5
    loss = 0.0
    for i in range(n_classes):
        s = inputs[:, i].astype(jnp.float32)
        tt = onehot[:, i]
        inter = jnp.sum(s * tt)
        y = jnp.sum(tt * tt)
        z = jnp.sum(s * s)
        d = 1.0 - (2.0 * inter + smooth) / (z + y + smooth)
        loss = loss + d * weight[i]
    return loss / n_classes


if __name__ == "__main__":
    n_classes = 4
    N, H, W = 2, 16, 16

    key = jax.random.PRNGKey(0)
    k1, k2 = jax.random.split(key)
    inputs = jax.random.normal(k1, (N, n_classes, H, W), dtype=jnp.float32)
    target = jax.random.randint(k2, (N, H, W), 0, n_classes, dtype=jnp.int32)

    # softmax path (in-kernel softmax, approx-recip + Newton)
    loss_sm = jax.block_until_ready(
        dice_loss(inputs, target, n_classes, softmax=True))
    ref_sm = jax.block_until_ready(
        _dice_loss_ref(inputs, target, n_classes, softmax=True))
    assert jnp.allclose(loss_sm, ref_sm, rtol=1e-4, atol=1e-5), (loss_sm, ref_sm)

    # raw-score path
    loss_raw = jax.block_until_ready(
        dice_loss(inputs, target, n_classes, softmax=False))
    ref_raw = jax.block_until_ready(
        _dice_loss_ref(inputs, target, n_classes, softmax=False))
    assert jnp.allclose(loss_raw, ref_raw, rtol=1e-5, atol=1e-6), (loss_raw, ref_raw)

    print("KERNEL_OK")
</pallas_src>

<mosaic_0001>
module attributes {stable_mosaic.version = 11 : i64} {
  func.func @kernel(%arg0: i32, %arg1: i32, %arg2: memref<1x4x32x128xf32, #tpu.memory_space<vmem>>, %arg3: memref<1x32x128xi32, #tpu.memory_space<vmem>>, %arg4: memref<1x4x3xf32, #tpu.memory_space<vmem>>, %arg5: memref<4x128xf32, #tpu.memory_space<vmem>>, %arg6: memref<4x128xf32, #tpu.memory_space<vmem>>, %arg7: memref<4x128xf32, #tpu.memory_space<vmem>>) attributes {dimension_semantics = [#tpu.dimension_semantics<parallel>, #tpu.dimension_semantics<arbitrary>], iteration_bounds = array<i64: 2, 1>, scalar_prefetch = 0 : i64, scratch_operands = 3 : i64, tpu.core_type = #tpu.core_type<tc>, window_params = [{transform_indices = @transform_0, window_bounds = array<i64: 1, 4, 32, 128>}, {transform_indices = @transform_1, window_bounds = array<i64: 1, 32, 128>}, {transform_indices = @transform_2, window_bounds = array<i64: 1, 4, 3>}]} {
    %c0_i32 = arith.constant 0 : i32
    %0 = arith.cmpi eq, %arg1, %c0_i32 : i32
    %1 = arith.extui %0 : i1 to i32
    %c0_i32_0 = arith.constant 0 : i32
    %2 = arith.cmpi ne, %1, %c0_i32_0 : i32
    scf.if %2 {
      %cst_60 = arith.constant 0.000000e+00 : f32
      %117 = vector.broadcast %cst_60 : f32 to vector<4x128xf32>
      %c0_61 = arith.constant 0 : index
      %c0_62 = arith.constant 0 : index
      %118 = vector.load %arg5[%c0_61, %c0_62] : memref<4x128xf32, #tpu.memory_space<vmem>>, vector<4x128xf32>
      tpu.vector_store %arg5[%c0_61, %c0_62], %117 {strides = array<i32>} : memref<4x128xf32, #tpu.memory_space<vmem>>, vector<4x128xf32>,
      %cst_63 = arith.constant 0.000000e+00 : f32
      %119 = vector.broadcast %cst_63 : f32 to vector<4x128xf32>
      %c0_64 = arith.constant 0 : index
      %c0_65 = arith.constant 0 : index
      %120 = vector.load %arg6[%c0_64, %c0_65] : memref<4x128xf32, #tpu.memory_space<vmem>>, vector<4x128xf32>
      tpu.vector_store %arg6[%c0_64, %c0_65], %119 {strides = array<i32>} : memref<4x128xf32, #tpu.memory_space<vmem>>, vector<4x128xf32>,
      %cst_66 = arith.constant 0.000000e+00 : f32
      %121 = vector.broadcast %cst_66 : f32 to vector<4x128xf32>
      %c0_67 = arith.constant 0 : index
      %c0_68 = arith.constant 0 : index
      %122 = vector.load %arg7[%c0_67, %c0_68] : memref<4x128xf32, #tpu.memory_space<vmem>>, vector<4x128xf32>
      tpu.vector_store %arg7[%c0_67, %c0_68], %121 {strides = array<i32>} : memref<4x128xf32, #tpu.memory_space<vmem>>, vector<4x128xf32>,
    } else {
    }
    %c0 = arith.constant 0 : index
    %c0_1 = arith.constant 0 : index
    %c0_2 = arith.constant 0 : index
    %3 = vector.load %arg3[%c0, %c0_1, %c0_2] : memref<1x32x128xi32, #tpu.memory_space<vmem>>, vector<1x32x128xi32>
    %4 = vector.shape_cast %3 : vector<1x32x128xi32> to vector<32x128xi32>
    %c0_3 = arith.constant 0 : index
    %c0_4 = arith.constant 0 : index
    %c0_5 = arith.constant 0 : index
    %c0_6 = arith.constant 0 : index
    %5 = vector.load %arg2[%c0_3, %c0_4, %c0_5, %c0_6] : memref<1x4x32x128xf32, #tpu.memory_space<vmem>>, vector<1x1x32x128xf32>
    %6 = vector.shape_cast %5 : vector<1x1x32x128xf32> to vector<32x128xf32>
    %c0_7 = arith.constant 0 : index
    %c1 = arith.constant 1 : index
    %c0_8 = arith.constant 0 : index
    %c0_9 = arith.constant 0 : index
    %7 = vector.load %arg2[%c0_7, %c1, %c0_8, %c0_9] : memref<1x4x32x128xf32, #tpu.memory_space<vmem>>, vector<1x1x32x128xf32>
    %8 = vector.shape_cast %7 : vector<1x1x32x128xf32> to vector<32x128xf32>
    %c0_10 = arith.constant 0 : index
    %c2 = arith.constant 2 : index
    %c0_11 = arith.constant 0 : index
    %c0_12 = arith.constant 0 : index
    %9 = vector.load %arg2[%c0_10, %c2, %c0_11, %c0_12] : memref<1x4x32x128xf32, #tpu.memory_space<vmem>>, vector<1x1x32x128xf32>
    %10 = vector.shape_cast %9 : vector<1x1x32x128xf32> to vector<32x128xf32>
    %c0_13 = arith.constant 0 : index
    %c3 = arith.constant 3 : index
    %c0_14 = arith.constant 0 : index
    %c0_15 = arith.constant 0 : index
    %11 = vector.load %arg2[%c0_13, %c3, %c0_14, %c0_15] : memref<1x4x32x128xf32, #tpu.memory_space<vmem>>, vector<1x1x32x128xf32>
    %12 = vector.shape_cast %11 : vector<1x1x32x128xf32> to vector<32x128xf32>
    %13 = arith.maximumf %6, %8 : vector<32x128xf32>
    %14 = arith.maximumf %13, %10 : vector<32x128xf32>
    %15 = arith.maximumf %14, %12 : vector<32x128xf32>
    %16 = arith.subf %6, %15 : vector<32x128xf32>
    %17 = math.exp %16 : vector<32x128xf32>
    %18 = arith.subf %8, %15 : vector<32x128xf32>
    %19 = math.exp %18 : vector<32x128xf32>
    %20 = arith.subf %10, %15 : vector<32x128xf32>
    %21 = math.exp %20 : vector<32x128xf32>
    %22 = arith.subf %12, %15 : vector<32x128xf32>
    %23 = math.exp %22 : vector<32x128xf32>
    %24 = arith.addf %17, %19 : vector<32x128xf32>
    %25 = arith.addf %24, %21 : vector<32x128xf32>
    %26 = arith.addf %25, %23 : vector<32x128xf32>
    %27 = tpu.reciprocal %26 {approx = true} : vector<32x128xf32> -> vector<32x128xf32>
    %28 = arith.mulf %26, %27 : vector<32x128xf32>
    %cst = arith.constant 2.000000e+00 : f32
    %29 = vector.broadcast %cst : f32 to vector<32x128xf32>
    %30 = arith.subf %29, %28 : vector<32x128xf32>
    %31 = arith.mulf %27, %30 : vector<32x128xf32>
    %32 = arith.mulf %17, %31 : vector<32x128xf32>
    %33 = arith.mulf %19, %31 : vector<32x128xf32>
    %34 = arith.mulf %21, %31 : vector<32x128xf32>
    %35 = arith.mulf %23, %31 : vector<32x128xf32>
    %c0_i32_16 = arith.constant 0 : i32
    %36 = vector.broadcast %c0_i32_16 : i32 to vector<32x128xi32>
    %37 = arith.cmpi sge, %4, %36 : vector<32x128xi32>
    %cst_17 = arith.constant 0.000000e+00 : f32
    %38 = vector.broadcast %cst_17 : f32 to vector<32x128xf32>
    %39 = arith.select %37, %32, %38 : vector<32x128xi1>, vector<32x128xf32>
    %cst_18 = arith.constant 0.000000e+00 : f32
    %40 = vector.broadcast %cst_18 : f32 to vector<32x128xf32>
    %41 = arith.select %37, %33, %40 : vector<32x128xi1>, vector<32x128xf32>
    %cst_19 = arith.constant 0.000000e+00 : f32
    %42 = vector.broadcast %cst_19 : f32 to vector<32x128xf32>
    %43 = arith.select %37, %34, %42 : vector<32x128xi1>, vector<32x128xf32>
    %cst_20 = arith.constant 0.000000e+00 : f32
    %44 = vector.broadcast %cst_20 : f32 to vector<32x128xf32>
    %45 = arith.select %37, %35, %44 : vector<32x128xi1>, vector<32x128xf32>
    %c0_i32_21 = arith.constant 0 : i32
    %46 = vector.broadcast %c0_i32_21 : i32 to vector<32x128xi32>
    %47 = arith.cmpi eq, %4, %46 : vector<32x128xi32>
    %cst_22 = arith.constant 0.000000e+00 : f32
    %48 = vector.broadcast %cst_22 : f32 to vector<32x128xf32>
    %49 = arith.select %47, %39, %48 : vector<32x128xi1>, vector<32x128xf32>
    %cst_23 = arith.constant dense<0.000000e+00> : vector<128xf32>
    %50 = vector.multi_reduction <add>, %49, %cst_23 [0] : vector<32x128xf32> to vector<128xf32>
    %51 = vector.shape_cast %50 : vector<128xf32> to vector<1x128xf32>
    %52 = arith.mulf %39, %39 : vector<32x128xf32>
    %cst_24 = arith.constant dense<0.000000e+00> : vector<128xf32>
    %53 = vector.multi_reduction <add>, %52, %cst_24 [0] : vector<32x128xf32> to vector<128xf32>
    %54 = vector.shape_cast %53 : vector<128xf32> to vector<1x128xf32>
    %cst_25 = arith.constant 1.000000e+00 : f32
    %cst_26 = arith.constant 0.000000e+00 : f32
    %55 = vector.broadcast %cst_25 : f32 to vector<32x128xf32>
    %56 = vector.broadcast %cst_26 : f32 to vector<32x128xf32>
    %57 = arith.select %47, %55, %56 : vector<32x128xi1>, vector<32x128xf32>
    %cst_27 = arith.constant dense<0.000000e+00> : vector<128xf32>
    %58 = vector.multi_reduction <add>, %57, %cst_27 [0] : vector<32x128xf32> to vector<128xf32>
    %59 = vector.shape_cast %58 : vector<128xf32> to vector<1x128xf32>
    %c1_i32 = arith.constant 1 : i32
    %60 = vector.broadcast %c1_i32 : i32 to vector<32x128xi32>
    %61 = arith.cmpi eq, %4, %60 : vector<32x128xi32>
    %cst_28 = arith.constant 0.000000e+00 : f32
    %62 = vector.broadcast %cst_28 : f32 to vector<32x128xf32>
    %63 = arith.select %61, %41, %62 : vector<32x128xi1>, vector<32x128xf32>
    %cst_29 = arith.constant dense<0.000000e+00> : vector<128xf32>
    %64 = vector.multi_reduction <add>, %63, %cst_29 [0] : vector<32x128xf32> to vector<128xf32>
    %65 = vector.shape_cast %64 : vector<128xf32> to vector<1x128xf32>
    %66 = arith.mulf %41, %41 : vector<32x128xf32>
    %cst_30 = arith.constant dense<0.000000e+00> : vector<128xf32>
    %67 = vector.multi_reduction <add>, %66, %cst_30 [0] : vector<32x128xf32> to vector<128xf32>
    %68 = vector.shape_cast %67 : vector<128xf32> to vector<1x128xf32>
    %cst_31 = arith.constant 1.000000e+00 : f32
    %cst_32 = arith.constant 0.000000e+00 : f32
    %69 = vector.broadcast %cst_31 : f32 to vector<32x128xf32>
    %70 = vector.broadcast %cst_32 : f32 to vector<32x128xf32>
    %71 = arith.select %61, %69, %70 : vector<32x128xi1>, vector<32x128xf32>
    %cst_33 = arith.constant dense<0.000000e+00> : vector<128xf32>
    %72 = vector.multi_reduction <add>, %71, %cst_33 [0] : vector<32x128xf32> to vector<128xf32>
    %73 = vector.shape_cast %72 : vector<128xf32> to vector<1x128xf32>
    %c2_i32 = arith.constant 2 : i32
    %74 = vector.broadcast %c2_i32 : i32 to vector<32x128xi32>
    %75 = arith.cmpi eq, %4, %74 : vector<32x128xi32>
    %cst_34 = arith.constant 0.000000e+00 : f32
    %76 = vector.broadcast %cst_34 : f32 to vector<32x128xf32>
    %77 = arith.select %75, %43, %76 : vector<32x128xi1>, vector<32x128xf32>
    %cst_35 = arith.constant dense<0.000000e+00> : vector<128xf32>
    %78 = vector.multi_reduction <add>, %77, %cst_35 [0] : vector<32x128xf32> to vector<128xf32>
    %79 = vector.shape_cast %78 : vector<128xf32> to vector<1x128xf32>
    %80 = arith.mulf %43, %43 : vector<32x128xf32>
    %cst_36 = arith.constant dense<0.000000e+00> : vector<128xf32>
    %81 = vector.multi_reduction <add>, %80, %cst_36 [0] : vector<32x128xf32> to vector<128xf32>
    %82 = vector.shape_cast %81 : vector<128xf32> to vector<1x128xf32>
    %cst_37 = arith.constant 1.000000e+00 : f32
    %cst_38 = arith.constant 0.000000e+00 : f32
    %83 = vector.broadcast %cst_37 : f32 to vector<32x128xf32>
    %84 = vector.broadcast %cst_38 : f32 to vector<32x128xf32>
    %85 = arith.select %75, %83, %84 : vector<32x128xi1>, vector<32x128xf32>
    %cst_39 = arith.constant dense<0.000000e+00> : vector<128xf32>
    %86 = vector.multi_reduction <add>, %85, %cst_39 [0] : vector<32x128xf32> to vector<128xf32>
    %87 = vector.shape_cast %86 : vector<128xf32> to vector<1x128xf32>
    %c3_i32 = arith.constant 3 : i32
    %88 = vector.broadcast %c3_i32 : i32 to vector<32x128xi32>
    %89 = arith.cmpi eq, %4, %88 : vector<32x128xi32>
    %cst_40 = arith.constant 0.000000e+00 : f32
    %90 = vector.broadcast %cst_40 : f32 to vector<32x128xf32>
    %91 = arith.select %89, %45, %90 : vector<32x128xi1>, vector<32x128xf32>
    %cst_41 = arith.constant dense<0.000000e+00> : vector<128xf32>
    %92 = vector.multi_reduction <add>, %91, %cst_41 [0] : vector<32x128xf32> to vector<128xf32>
    %93 = vector.shape_cast %92 : vector<128xf32> to vector<1x128xf32>
    %94 = arith.mulf %45, %45 : vector<32x128xf32>
    %cst_42 = arith.constant dense<0.000000e+00> : vector<128xf32>
    %95 = vector.multi_reduction <add>, %94, %cst_42 [0] : vector<32x128xf32> to vector<128xf32>
    %96 = vector.shape_cast %95 : vector<128xf32> to vector<1x128xf32>
    %cst_43 = arith.constant 1.000000e+00 : f32
    %cst_44 = arith.constant 0.000000e+00 : f32
    %97 = vector.broadcast %cst_43 : f32 to vector<32x128xf32>
    %98 = vector.broadcast %cst_44 : f32 to vector<32x128xf32>
    %99 = arith.select %89, %97, %98 : vector<32x128xi1>, vector<32x128xf32>
    %cst_45 = arith.constant dense<0.000000e+00> : vector<128xf32>
    %100 = vector.multi_reduction <add>, %99, %cst_45 [0] : vector<32x128xf32> to vector<128xf32>
    %101 = vector.shape_cast %100 : vector<128xf32> to vector<1x128xf32>
    %c0_46 = arith.constant 0 : index
    %c0_47 = arith.constant 0 : index
    %102 = vector.load %arg5[%c0_46, %c0_47] : memref<4x128xf32, #tpu.memory_space<vmem>>, vector<4x128xf32>
    %103 = tpu.concatenate %51, %65, %79, %93 in 0 : vector<1x128xf32>, vector<1x128xf32>, vector<1x128xf32>, vector<1x128xf32> -> vector<4x128xf32>
    %104 = arith.addf %102, %103 : vector<4x128xf32>
    %c0_48 = arith.constant 0 : index
    %c0_49 = arith.constant 0 : index
    %105 = vector.load %arg5[%c0_48, %c0_49] : memref<4x128xf32, #tpu.memory_space<vmem>>, vector<4x128xf32>
    tpu.vector_store %arg5[%c0_48, %c0_49], %104 {strides = array<i32>} : memref<4x128xf32, #tpu.memory_space<vmem>>, vector<4x128xf32>,
    %c0_50 = arith.constant 0 : index
    %c0_51 = arith.constant 0 : index
    %106 = vector.load %arg6[%c0_50, %c0_51] : memref<4x128xf32, #tpu.memory_space<vmem>>, vector<4x128xf32>
    %107 = tpu.concatenate %54, %68, %82, %96 in 0 : vector<1x128xf32>, vector<1x128xf32>, vector<1x128xf32>, vector<1x128xf32> -> vector<4x128xf32>
    %108 = arith.addf %106, %107 : vector<4x128xf32>
    %c0_52 = arith.constant 0 : index
    %c0_53 = arith.constant 0 : index
    %109 = vector.load %arg6[%c0_52, %c0_53] : memref<4x128xf32, #tpu.memory_space<vmem>>, vector<4x128xf32>
    tpu.vector_store %arg6[%c0_52, %c0_53], %108 {strides = array<i32>} : memref<4x128xf32, #tpu.memory_space<vmem>>, vector<4x128xf32>,
    %c0_54 = arith.constant 0 : index
    %c0_55 = arith.constant 0 : index
    %110 = vector.load %arg7[%c0_54, %c0_55] : memref<4x128xf32, #tpu.memory_space<vmem>>, vector<4x128xf32>
    %111 = tpu.concatenate %59, %73, %87, %101 in 0 : vector<1x128xf32>, vector<1x128xf32>, vector<1x128xf32>, vector<1x128xf32> -> vector<4x128xf32>
    %112 = arith.addf %110, %111 : vector<4x128xf32>
    %c0_56 = arith.constant 0 : index
    %c0_57 = arith.constant 0 : index
    %113 = vector.load %arg7[%c0_56, %c0_57] : memref<4x128xf32, #tpu.memory_space<vmem>>, vector<4x128xf32>
    tpu.vector_store %arg7[%c0_56, %c0_57], %112 {strides = array<i32>} : memref<4x128xf32, #tpu.memory_space<vmem>>, vector<4x128xf32>,
    %c0_i32_58 = arith.constant 0 : i32
    %114 = arith.cmpi eq, %arg1, %c0_i32_58 : i32
    %115 = arith.extui %114 : i1 to i32
    %c0_i32_59 = arith.constant 0 : i32
    %116 = arith.cmpi ne, %115, %c0_i32_59 : i32
    scf.if %116 {
      %c0_60 = arith.constant 0 : index
      %c0_61 = arith.constant 0 : index
      %117 = vector.load %arg5[%c0_60, %c0_61] : memref<4x128xf32, #tpu.memory_space<vmem>>, vector<4x128xf32>
      %cst_62 = arith.constant dense<0.000000e+00> : vector<4xf32>
      %118 = vector.multi_reduction <add>, %117, %cst_62 [1] : vector<4x128xf32> to vector<4xf32>
      %119 = vector.shape_cast %118 : vector<4xf32> to vector<4x1xf32>
      %c0_63 = arith.constant 0 : index
      %c0_64 = arith.constant 0 : index
      %c0_65 = arith.constant 0 : index
      %120 = vector.load %arg4[%c0_63, %c0_64, %c0_65] : memref<1x4x3xf32, #tpu.memory_space<vmem>>, vector<1x4x1xf32>
      %121 = vector.shape_cast %120 : vector<1x4x1xf32> to vector<4x1xf32>
      %122 = vector.shape_cast %119 : vector<4x1xf32> to vector<1x4x1xf32>
      tpu.vector_store %arg4[%c0_63, %c0_64, %c0_65], %122 {strides = array<i32>} : memref<1x4x3xf32, #tpu.memory_space<vmem>>, vector<1x4x1xf32>,
      %c0_66 = arith.constant 0 : index
      %c0_67 = arith.constant 0 : index
      %123 = vector.load %arg6[%c0_66, %c0_67] : memref<4x128xf32, #tpu.memory_space<vmem>>, vector<4x128xf32>
      %cst_68 = arith.constant dense<0.000000e+00> : vector<4xf32>
      %124 = vector.multi_reduction <add>, %123, %cst_68 [1] : vector<4x128xf32> to vector<4xf32>
      %125 = vector.shape_cast %124 : vector<4xf32> to vector<4x1xf32>
      %c0_69 = arith.constant 0 : index
      %c0_70 = arith.constant 0 : index
      %c1_71 = arith.constant 1 : index
      %126 = vector.load %arg4[%c0_69, %c0_70, %c1_71] : memref<1x4x3xf32, #tpu.memory_space<vmem>>, vector<1x4x1xf32>
      %127 = vector.shape_cast %126 : vector<1x4x1xf32> to vector<4x1xf32>
      %128 = vector.shape_cast %125 : vector<4x1xf32> to vector<1x4x1xf32>
      tpu.vector_store %arg4[%c0_69, %c0_70, %c1_71], %128 {strides = array<i32>} : memref<1x4x3xf32, #tpu.memory_space<vmem>>, vector<1x4x1xf32>,
      %c0_72 = arith.constant 0 : index
      %c0_73 = arith.constant 0 : index
      %129 = vector.load %arg7[%c0_72, %c0_73] : memref<4x128xf32, #tpu.memory_space<vmem>>, vector<4x128xf32>
      %cst_74 = arith.constant dense<0.000000e+00> : vector<4xf32>
      %130 = vector.multi_reduction <add>, %129, %cst_74 [1] : vector<4x128xf32> to vector<4xf32>
      %131 = vector.shape_cast %130 : vector<4xf32> to vector<4x1xf32>
      %c0_75 = arith.constant 0 : index
      %c0_76 = arith.constant 0 : index
      %c2_77 = arith.constant 2 : index
      %132 = vector.load %arg4[%c0_75, %c0_76, %c2_77] : memref<1x4x3xf32, #tpu.memory_space<vmem>>, vector<1x4x1xf32>
      %133 = vector.shape_cast %132 : vector<1x4x1xf32> to vector<4x1xf32>
      %134 = vector.shape_cast %131 : vector<4x1xf32> to vector<1x4x1xf32>
      tpu.vector_store %arg4[%c0_75, %c0_76, %c2_77], %134 {strides = array<i32>} : memref<1x4x3xf32, #tpu.memory_space<vmem>>, vector<1x4x1xf32>,
    } else {
    }
    return
  }
  func.func @transform_0(%arg0: i32, %arg1: i32) -> (i32, i32, i32, i32) {
    %c0_i32 = arith.constant 0 : i32
    %c0_i32_0 = arith.constant 0 : i32
    %c0_i32_1 = arith.constant 0 : i32
    return %arg0, %c0_i32, %arg1, %c0_i32_0 : i32, i32, i32, i32
  }
  func.func @transform_1(%arg0: i32, %arg1: i32) -> (i32, i32, i32) {
    %c0_i32 = arith.constant 0 : i32
    %c0_i32_0 = arith.constant 0 : i32
    return %arg0, %arg1, %c0_i32 : i32, i32, i32
  }
  func.func @transform_2(%arg0: i32, %arg1: i32) -> (i32, i32, i32) {
    %c0_i32 = arith.constant 0 : i32
    %c0_i32_0 = arith.constant 0 : i32
    %c0_i32_1 = arith.constant 0 : i32
    return %arg0, %c0_i32, %c0_i32_0 : i32, i32, i32
  }
}

</mosaic_0001>

<llo_original>
// kernel: tpu_custom_call.1
$region0: #{tpu_custom_call.1}
  #allocation0 [shape = 'u32[]', space=smem, size = 0x4, offset = 0x4, fixed_abs, tag = 'smem constant byte address 0x4 - core index']
  #allocation1 [shape = 'u32[144,128]{1,0:T(1,128)}', space=vmem, size = 0x12000, scoped, tag = 'internal scratch']
  #allocation2 [shape = 'f32[4,128]{1,0:T(4,128)}', space=vmem, size = 0x800, scoped, tag = 'scratch operand']
  #allocation3 [shape = 'f32[4,128]{1,0:T(4,128)}', space=vmem, size = 0x800, scoped, tag = 'scratch operand']
  #allocation4 [shape = 'f32[4,128]{1,0:T(4,128)}', space=vmem, size = 0x800, scoped, tag = 'scratch operand']
  %s0 = inlined_call_operand.hbm [shape: f32[2,4,32,128], index: 0, kind: input, shape index: {}]
  %s1 = inlined_call_operand.hbm [shape: s32[2,32,128], index: 1, kind: input, shape index: {}]
  %s2 = inlined_call_operand.vmem [shape: f32[2,4,3], index: 2, kind: output, shape index: {}]
  %s3 = sld [smem:[#allocation0]]
  $region57: #{tpu_custom_call.1} parent=0
    _
  %s5 = ssub.s32 1, %s3
  %s6 = scalar_select 0, %s5, %s3
  $region1: #{tpu_custom_call.1} parent=0
    #allocation5 [shape = 'u8[131072]{0}', space=vmem, size = 0x20000, scoped, tag = 'input window, operand 0']
    #allocation6 [shape = 's32[2]{0}', space=sflag, size = 0x8, scoped, tag = 'scoped memory for tpu_custom_call.1']
    #allocation7 [shape = 'u8[32768]{0}', space=vmem, size = 0x8000, scoped, tag = 'input window, operand 1']
    #allocation8 [shape = 's32[2]{0}', space=sflag, size = 0x8, scoped, tag = 'scoped memory for tpu_custom_call.1']
    %7 = vsyncpa [#allocation6], 0
    %s8 = scalar_lea.sflag [#allocation6], 1
    %9 = vsyncpa %s8, 0
    %10 = vsyncpa [#allocation8], 0
    %s11 = scalar_lea.sflag [#allocation8], 1
    %12 = vsyncpa %s11, 0
    loop: start=0, step=1, limit=4
    $region2: #{tpu_custom_call.1} parent=1 // loop_pre_header
      _
    $region3: #{tpu_custom_call.1} parent=1 // loop_header
      %s14 = sphi 0, %s18
      %p15 = scmp.ge.s32.totalorder %s14, 4
      %s21 = sphi 0, %s33
      %s22 = sphi 0, %s29
      %s23 = sphi 0, %s21
      %s24 = sphi 0, %s22
      %s25 = sphi 0, %s23
      %s26 = sphi 0, %s24
      %s38 = sphi 0, %s40
      %s41 = sphi 0, %s38
      %s42 = sphi 0, %s41
      %s58 = sphi 0, %s42
      %s66 = sphi 0, %s68
      %s69 = sphi 0, %s66
      %s70 = sphi 0, %s69
      %s86 = sphi 0, %s70
      %s92 = sphi 0, %s94
      %s95 = sphi 0, %s92
      %s96 = sphi 0, %s95
      %s112 = sphi 0, %s96
    $region4: #{tpu_custom_call.1} parent=1 // loop_header_branch
      %17 = sbr.rel (%p15) target = $region8
    $region5: #{tpu_custom_call.1} parent=1 // loop_body
      %s19 = ssub.s32 %s14, 1
      %s20 = ssub.s32 %s14, 2
      %s27 = sadd.s32 1, %s22
      %p28 = scmp.ge.s32.totalorder %s27, 1
      %s29 = scalar_select %p28, 0, %s27
      %s30 = sadd.s32 1, %s21
      %s31 = scalar_select %p28, %s30, %s21
      %p32 = scmp.ge.s32.totalorder %s31, 2
      %s33 = scalar_select %p32, 0, %s31
      %s34 = ssub.s32 %s21, %s33
      %s35 = ssub.s32 %s22, %s29
      %s36 = sor.u32 %s34, %s35
      %p37 = scmp.eq.s32.totalorder %s36, 0
      %s39 = sadd.s32 %s38, 1
      %s40 = scalar_select %p37, %s38, %s39
      %p43 = pneg %p37
      %p44 = scmp.eq.s32.totalorder %s14, 1
      %p45 = por %p43, %p44
      %p46 = scmp.ne.s32.totalorder %s38, %s41
      %p47 = scmp.eq.s32.totalorder %s14, 0
      %p48 = por %p46, %p47
      %p49 = scmp.ne.s32.totalorder %s38, %s41
      %p50 = scmp.eq.s32.totalorder %s19, 1
      %p51 = por %p49, %p50
      %p52 = scmp.ne.s32.totalorder %s41, %s42
      %p53 = scmp.eq.s32.totalorder %s19, 0
      %p54 = por %p52, %p53
      %p55 = scmp.ne.s32.totalorder %s41, %s42
      %p56 = scmp.eq.s32.totalorder %s20, 1
      %p57 = por %p55, %p56
      %p59 = scmp.ne.s32.totalorder %s42, %s58
      %p60 = scmp.eq.s32.totalorder %s20, 0
      %p61 = por %p59, %p60
      %s62 = ssub.s32 %s21, %s33
      %s63 = ssub.s32 %s22, %s29
      %s64 = sor.u32 %s62, %s63
      %p65 = scmp.eq.s32.totalorder %s64, 0
      %s67 = sadd.s32 %s66, 1
      %s68 = scalar_select %p65, %s66, %s67
      %p71 = pneg %p65
      %p72 = scmp.eq.s32.totalorder %s14, 1
      %p73 = por %p71, %p72
      %p74 = scmp.ne.s32.totalorder %s66, %s69
      %p75 = scmp.eq.s32.totalorder %s14, 0
      %p76 = por %p74, %p75
      %p77 = scmp.ne.s32.totalorder %s66, %s69
      %p78 = scmp.eq.s32.totalorder %s19, 1
      %p79 = por %p77, %p78
      %p80 = scmp.ne.s32.totalorder %s69, %s70
      %p81 = scmp.eq.s32.totalorder %s19, 0
      %p82 = por %p80, %p81
      %p83 = scmp.ne.s32.totalorder %s69, %s70
      %p84 = scmp.eq.s32.totalorder %s20, 1
      %p85 = por %p83, %p84
      %p87 = scmp.ne.s32.totalorder %s70, %s86
      %p88 = scmp.eq.s32.totalorder %s20, 0
      %p89 = por %p87, %p88
      %s90 = ssub.s32 %s21, %s33
      %p91 = scmp.eq.s32.totalorder %s90, 0
      %s93 = sadd.s32 %s92, 1
      %s94 = scalar_select %p91, %s92, %s93
      %p97 = pneg %p91
      %p98 = scmp.eq.s32.totalorder %s14, 1
      %p99 = por %p97, %p98
      %p100 = scmp.ne.s32.totalorder %s92, %s95
      %p101 = scmp.eq.s32.totalorder %s14, 0
      %p102 = por %p100, %p101
      %p103 = scmp.ne.s32.totalorder %s92, %s95
      %p104 = scmp.eq.s32.totalorder %s19, 1
      %p105 = por %p103, %p104
      %p106 = scmp.ne.s32.totalorder %s95, %s96
      %p107 = scmp.eq.s32.totalorder %s19, 0
      %p108 = por %p106, %p107
      %p109 = scmp.ne.s32.totalorder %s95, %s96
      %p110 = scmp.eq.s32.totalorder %s20, 1
      %p111 = por %p109, %p110
      %p113 = scmp.ne.s32.totalorder %s96, %s112
      %p114 = scmp.eq.s32.totalorder %s20, 0
      %p115 = por %p113, %p114
      %p116 = scmp.le.s32.totalorder 1, %s14
      %p117 = scmp.lt.s32.totalorder %s14, 3
      %p118 = pnand %p116, %p117
      %p119 = pneg %p118
      // Predicated region
      $region9: #{tpu_custom_call.1} parent=5 // pred_check
        _
      $region10: #{tpu_custom_call.1} parent=5 // pred_check_branch
        %121 = sbr.rel (%p118) target = $region12
      $region11: #{tpu_custom_call.1} parent=5 // pred_region
        %s122 = ssub.s32 %s14, 1
      $region12: #{tpu_custom_call.1} parent=5 // pred_fallthru
        _
      %p123 = scmp.lt.s32.totalorder %s14, 2
      // Predicated region
      $region13: #{tpu_custom_call.1} parent=5 // pred_check
        %p124 = pneg %p123
      $region14: #{tpu_custom_call.1} parent=5 // pred_check_branch
        %126 = sbr.rel (%p124) target = $region16
      $region15: #{tpu_custom_call.1} parent=5 // pred_region
        // Predicated region
        $region17: #{tpu_custom_call.1} parent=15 // pred_check
          %p127 = pneg %p48
        $region18: #{tpu_custom_call.1} parent=15 // pred_check_branch
          %129 = sbr.rel (%p127) target = $region20
        $region19: #{tpu_custom_call.1} parent=15 // pred_region
          %s130 = sand.u32 %s38, 1
          %s131 = scalar_lea.sflag [#allocation6], %s130
          %s132 = sand.u32 %s38, 1
          %s133 = smul.addr %s132, 128
          %s134 = scalar_lea.vmem [#allocation5], %s133
          %s135 = smul.u32 4, %s22
          %s137 = ssub.s32 2048, 2048
          %138 = vsyncadd %s131, %s137
          %s139 = smul.addr %s21, 16
          %s140 = sadd.s32 %s135, %s139
          %s141 = smul.addr %s140, 128
          %s142 = scalar_lea.hbm %s0, %s141
          %s143 = sshll.u32 %s134, 4
          %s144 = int_to_ptr.vmem [resolvable:$true] %s143
          %149 = dma.hbm_to_vmem [thread:$0]  %s142, 2048, %s144, %s131, 128, 128, 8
        $region20: #{tpu_custom_call.1} parent=15 // pred_fallthru
          _
        // Predicated region
        $region21: #{tpu_custom_call.1} parent=15 // pred_check
          %p150 = pneg %p76
        $region22: #{tpu_custom_call.1} parent=15 // pred_check_branch
          %152 = sbr.rel (%p150) target = $region24
        $region23: #{tpu_custom_call.1} parent=15 // pred_region
          %s153 = sand.u32 %s66, 1
          %s154 = scalar_lea.sflag [#allocation8], %s153
          %s155 = sand.u32 %s66, 1
          %s156 = smul.addr %s155, 32
          %s157 = scalar_lea.vmem [#allocation7], %s156
          %s158 = smul.u32 4, %s22
          %s160 = ssub.s32 512, 512
          %161 = vsyncadd %s154, %s160
          %s162 = smul.addr %s21, 4
          %s163 = sadd.s32 %s158, %s162
          %s164 = smul.addr %s163, 128
          %s165 = scalar_lea.hbm %s1, %s164
          %s166 = sshll.u32 %s157, 4
          %s167 = int_to_ptr.vmem [resolvable:$true] %s166
          %172 = dma.hbm_to_vmem [thread:$0]  %s165, 512, %s167, %s154, 128, 128, 8
        $region24: #{tpu_custom_call.1} parent=15 // pred_fallthru
          _
      $region16: #{tpu_custom_call.1} parent=5 // pred_fallthru
        _
      %p173 = scmp.le.s32.totalorder 1, %s14
      %p174 = scmp.lt.s32.totalorder %s14, 3
      %p175 = pnand %p173, %p174
      %p176 = pneg %p175
      // Predicated region
      $region25: #{tpu_custom_call.1} parent=5 // pred_check
        _
      $region26: #{tpu_custom_call.1} parent=5 // pred_check_branch
        %178 = sbr.rel (%p175) target = $region28
      $region27: #{tpu_custom_call.1} parent=5 // pred_region
        %s179 = ssub.s32 %s14, 1
        %s180 = sand.u32 %s41, 1
        %s181 = scalar_lea.sflag [#allocation6], %s180
        %s182 = sand.u32 %s41, 1
        %s183 = smul.addr %s182, 128
        %s184 = scalar_lea.vmem [#allocation5], %s183
        // Predicated region
        $region29: #{tpu_custom_call.1} parent=27 // pred_check
          %p185 = pneg %p54
        $region30: #{tpu_custom_call.1} parent=27 // pred_check_branch
          %187 = sbr.rel (%p185) target = $region32
        $region31: #{tpu_custom_call.1} parent=27 // pred_region
          %188 = dma.done %s181, 2048
        $region32: #{tpu_custom_call.1} parent=27 // pred_fallthru
          _
        %s189 = sand.u32 %s69, 1
        %s190 = scalar_lea.sflag [#allocation8], %s189
        %s191 = sand.u32 %s69, 1
        %s192 = smul.addr %s191, 32
        %s193 = scalar_lea.vmem [#allocation7], %s192
        // Predicated region
        $region33: #{tpu_custom_call.1} parent=27 // pred_check
          %p194 = pneg %p82
        $region34: #{tpu_custom_call.1} parent=27 // pred_check_branch
          %196 = sbr.rel (%p194) target = $region36
        $region35: #{tpu_custom_call.1} parent=27 // pred_region
          %197 = dma.done %s190, 512
        $region36: #{tpu_custom_call.1} parent=27 // pred_fallthru
          _
        %s198 = sand.u32 %s41, 1
        %s199 = scalar_lea.sflag [#allocation6], %s198
        %s200 = sand.u32 %s41, 1
        %s201 = smul.addr %s200, 128
        %s202 = scalar_lea.vmem [#allocation5], %s201
        %p203 = pneg %p54
        %p204 = pneg %p51
        %s205 = sand.u32 %s69, 1
        %s206 = scalar_lea.sflag [#allocation8], %s205
        %s207 = sand.u32 %s69, 1
        %s208 = smul.addr %s207, 32
        %s209 = scalar_lea.vmem [#allocation7], %s208
        %p210 = pneg %p82
        %p211 = pneg %p79
        %p212 = pneg %p108
        %p213 = pneg %p105
        %p214 = scmp.lt.s32.totalorder %s23, 1
        %s215 = scalar_select %p214, %s23, 1
        %s216 = smul.addr %s215, 4
        %s217 = scalar_lea.vmem %s2, %s216
        %s218 = smul.u32 4, %s24
        %s219 = smul.u32 4, %s24
        %p220 = scmp.lt.s32.totalorder %s23, 1
        %s221 = scalar_select %p220, %s23, 1
        %s222 = smul.addr %s221, 4
        %s223 = scalar_lea.vmem %s2, %s222
        %p224 = scmp.eq.s32.totalorder %s24, 0
        // Predicated region
        $region37: #{tpu_custom_call.1} parent=27 // pred_check
          %p225 = pneg %p224
        $region38: #{tpu_custom_call.1} parent=27 // pred_check_branch
          %227 = sbr.rel (%p225) target = $region40
        $region39: #{tpu_custom_call.1} parent=27 // pred_region
          %228 = vst [vmem:[#allocation2] sm:$0xf] 0.0
          %229 = vst [vmem:[#allocation3] sm:$0xf] 0.0
          %230 = vst [vmem:[#allocation4] sm:$0xf] 0.0
        $region40: #{tpu_custom_call.1} parent=27 // pred_fallthru
          _
        %v231 = vld [vmem:[%s193] sm:$0xff]
        %v232 = vld [vmem:[%s193 + $0x8] sm:$0xff]
        %v233 = vld [vmem:[%s193 + $0x10] sm:$0xff]
        %v234 = vld [vmem:[%s193 + $0x18] sm:$0xff]
        %v235 = vld [vmem:[%s184] sm:$0xff]
        %v236 = vld [vmem:[%s184 + $0x8] sm:$0xff]
        %v237 = vld [vmem:[%s184 + $0x10] sm:$0xff]
        %v238 = vld [vmem:[%s184 + $0x18] sm:$0xff]
        %s239 = scalar_lea.vmem %s184, 32 [#allocation5]
        %v240 = vld [vmem:[%s239] sm:$0xff]
        %v241 = vld [vmem:[%s239 + $0x8] sm:$0xff]
        %v242 = vld [vmem:[%s239 + $0x10] sm:$0xff]
        %v243 = vld [vmem:[%s239 + $0x18] sm:$0xff]
        %s244 = scalar_lea.vmem %s184, 64 [#allocation5]
        %v245 = vld [vmem:[%s244] sm:$0xff]
        %v246 = vld [vmem:[%s244 + $0x8] sm:$0xff]
        %v247 = vld [vmem:[%s244 + $0x10] sm:$0xff]
        %v248 = vld [vmem:[%s244 + $0x18] sm:$0xff]
        %s249 = scalar_lea.vmem %s184, 96 [#allocation5]
        %v250 = vld [vmem:[%s249] sm:$0xff]
        %v251 = vld [vmem:[%s249 + $0x8] sm:$0xff]
        %v252 = vld [vmem:[%s249 + $0x10] sm:$0xff]
        %v253 = vld [vmem:[%s249 + $0x18] sm:$0xff]
        %v254 = vmax.f32 %v235, %v240
        %v255 = vmax.f32 %v236, %v241
        %v256 = vmax.f32 %v237, %v242
        %v257 = vmax.f32 %v238, %v243
        %v258 = vmax.f32 %v254, %v245
        %v259 = vmax.f32 %v255, %v246
        %v260 = vmax.f32 %v256, %v247
        %v261 = vmax.f32 %v257, %v248
        %v262 = vmax.f32 %v258, %v250
        %v263 = vmax.f32 %v259, %v251
        %v264 = vmax.f32 %v260, %v252
        %v265 = vmax.f32 %v261, %v253
        %v266 = vsub.f32 %v235, %v262
        %v267 = vsub.f32 %v236, %v263
        %v268 = vsub.f32 %v237, %v264
        %v269 = vsub.f32 %v238, %v265
        %v270 = vmul.f32 %v266, 1.442695
        %v271 = vpow.pop %v270
        %v272 = vmul.f32 %v267, 1.442695
        %v273 = vpow.pop %v272
        %v274 = vmul.f32 %v268, 1.442695
        %v275 = vpow.pop %v274
        %v276 = vmul.f32 %v269, 1.442695
        %v277 = vpow.pop %v276
        %v278 = vsub.f32 %v240, %v262
        %v279 = vsub.f32 %v241, %v263
        %v280 = vsub.f32 %v242, %v264
        %v281 = vsub.f32 %v243, %v265
        %v282 = vmul.f32 %v278, 1.442695
        %v283 = vpow.pop %v282
        %v284 = vmul.f32 %v279, 1.442695
        %v285 = vpow.pop %v284
        %v286 = vmul.f32 %v280, 1.442695
        %v287 = vpow.pop %v286
        %v288 = vmul.f32 %v281, 1.442695
        %v289 = vpow.pop %v288
        %v290 = vsub.f32 %v245, %v262
        %v291 = vsub.f32 %v246, %v263
        %v292 = vsub.f32 %v247, %v264
        %v293 = vsub.f32 %v248, %v265
        %v294 = vmul.f32 %v290, 1.442695
        %v295 = vpow.pop %v294
        %v296 = vmul.f32 %v291, 1.442695
        %v297 = vpow.pop %v296
        %v298 = vmul.f32 %v292, 1.442695
        %v299 = vpow.pop %v298
        %v300 = vmul.f32 %v293, 1.442695
        %v301 = vpow.pop %v300
        %v302 = vsub.f32 %v250, %v262
        %v303 = vsub.f32 %v251, %v263
        %v304 = vsub.f32 %v252, %v264
        %v305 = vsub.f32 %v253, %v265
        %v306 = vmul.f32 %v302, 1.442695
        %v307 = vpow.pop %v306
        %v308 = vmul.f32 %v303, 1.442695
        %v309 = vpow.pop %v308
        %v310 = vmul.f32 %v304, 1.442695
        %v311 = vpow.pop %v310
        %v312 = vmul.f32 %v305, 1.442695
        %v313 = vpow.pop %v312
        %v314 = vadd.f32 %v271, %v283
        %v315 = vadd.f32 %v273, %v285
        %v316 = vadd.f32 %v275, %v287
        %v317 = vadd.f32 %v277, %v289
        %v318 = vadd.f32 %v314, %v295
        %v319 = vadd.f32 %v315, %v297
        %v320 = vadd.f32 %v316, %v299
        %v321 = vadd.f32 %v317, %v301
        %v322 = vadd.f32 %v318, %v307
        %v323 = vadd.f32 %v319, %v309
        %v324 = vadd.f32 %v320, %v311
        %v325 = vadd.f32 %v321, %v313
        %v326 = vrcp.pop %v322
        %v327 = vrcp.pop %v323
        %v328 = vrcp.pop %v324
        %v329 = vrcp.pop %v325
        %v330 = vmul.f32 %v322, %v326
        %v331 = vmul.f32 %v323, %v327
        %v332 = vmul.f32 %v324, %v328
        %v333 = vmul.f32 %v325, %v329
        %v334 = vsub.f32 2.0, %v330
        %v335 = vsub.f32 2.0, %v331
        %v336 = vsub.f32 2.0, %v332
        %v337 = vsub.f32 2.0, %v333
        %v338 = vmul.f32 %v326, %v334
        %v339 = vmul.f32 %v327, %v335
        %v340 = vmul.f32 %v328, %v336
        %v341 = vmul.f32 %v329, %v337
        %v342 = vmul.f32 %v271, %v338
        %v343 = vmul.f32 %v273, %v339
        %v344 = vmul.f32 %v275, %v340
        %v345 = vmul.f32 %v277, %v341
        %v346 = vmul.f32 %v283, %v338
        %v347 = vmul.f32 %v285, %v339
        %v348 = vmul.f32 %v287, %v340
        %v349 = vmul.f32 %v289, %v341
        %v350 = vmul.f32 %v295, %v338
        %v351 = vmul.f32 %v297, %v339
        %v352 = vmul.f32 %v299, %v340
        %v353 = vmul.f32 %v301, %v341
        %v354 = vmul.f32 %v307, %v338
        %v355 = vmul.f32 %v309, %v339
        %v356 = vmul.f32 %v311, %v340
        %v357 = vmul.f32 %v313, %v341
        %vm358 = vcmp.ge.s32.totalorder %v231, 0
        %vm359 = vcmp.ge.s32.totalorder %v232, 0
        %vm360 = vcmp.ge.s32.totalorder %v233, 0
        %vm361 = vcmp.ge.s32.totalorder %v234, 0
        %v362 = vsel %vm358, %v342, 0.0
        %v363 = vsel %vm359, %v343, 0.0
        %v364 = vsel %vm360, %v344, 0.0
        %v365 = vsel %vm361, %v345, 0.0
        %v366 = vsel %vm358, %v346, 0.0
        %v367 = vsel %vm359, %v347, 0.0
        %v368 = vsel %vm360, %v348, 0.0
        %v369 = vsel %vm361, %v349, 0.0
        %v370 = vsel %vm358, %v350, 0.0
        %v371 = vsel %vm359, %v351, 0.0
        %v372 = vsel %vm360, %v352, 0.0
        %v373 = vsel %vm361, %v353, 0.0
        %v374 = vsel %vm358, %v354, 0.0
        %v375 = vsel %vm359, %v355, 0.0
        %v376 = vsel %vm360, %v356, 0.0
        %v377 = vsel %vm361, %v357, 0.0
        %vm378 = vcmp.eq.s32.totalorder %v231, 0
        %vm379 = vcmp.eq.s32.totalorder %v232, 0
        %vm380 = vcmp.eq.s32.totalorder %v233, 0
        %vm381 = vcmp.eq.s32.totalorder %v234, 0
        %v382 = vsel %vm378, %v362, 0.0
        %v383 = vsel %vm379, %v363, 0.0
        %v384 = vsel %vm380, %v364, 0.0
        %v385 = vsel %vm381, %v365, 0.0
        %v386 = vadd.f32 %v382, %v383
        %v387 = vadd.f32 %v386, %v384
        %v388 = vadd.f32 %v387, %v385
        %v389 = vrot.slane %v388, 4
        %v390 = vadd.f32 %v388, %v389
        %v391 = vrot.slane %v390, 2
        %v392 = vadd.f32 %v390, %v391
        %v393 = vrot.slane %v392, 1
        %v394 = vadd.f32 %v392, %v393
        %v395 = vmul.f32 %v362, %v362
        %v396 = vmul.f32 %v363, %v363
        %v397 = vmul.f32 %v364, %v364
        %v398 = vmul.f32 %v365, %v365
        %v399 = vadd.f32 %v395, %v396
        %v400 = vadd.f32 %v399, %v397
        %v401 = vadd.f32 %v400, %v398
        %v402 = vrot.slane %v401, 4
        %v403 = vadd.f32 %v401, %v402
        %v404 = vrot.slane %v403, 2
        %v405 = vadd.f32 %v403, %v404
        %v406 = vrot.slane %v405, 1
        %v407 = vadd.f32 %v405, %v406
        %v408 = vsel %vm378, 1.0, 0.0
        %v409 = vsel %vm379, 1.0, 0.0
        %v410 = vsel %vm380, 1.0, 0.0
        %v411 = vsel %vm381, 1.0, 0.0
        %v412 = vadd.f32 %v408, %v409
        %v413 = vadd.f32 %v412, %v410
        %v414 = vadd.f32 %v413, %v411
        %v415 = vrot.slane %v414, 4
        %v416 = vadd.f32 %v414, %v415
        %v417 = vrot.slane %v416, 2
        %v418 = vadd.f32 %v416, %v417
        %v419 = vrot.slane %v418, 1
        %v420 = vadd.f32 %v418, %v419
        %vm421 = vcmp.eq.s32.totalorder %v231, 1
        %vm422 = vcmp.eq.s32.totalorder %v232, 1
        %vm423 = vcmp.eq.s32.totalorder %v233, 1
        %vm424 = vcmp.eq.s32.totalorder %v234, 1
        %v425 = vsel %vm421, %v366, 0.0
        %v426 = vsel %vm422, %v367, 0.0
        %v427 = vsel %vm423, %v368, 0.0
        %v428 = vsel %vm424, %v369, 0.0
        %v429 = vadd.f32 %v425, %v426
        %v430 = vadd.f32 %v429, %v427
        %v431 = vadd.f32 %v430, %v428
        %v432 = vrot.slane %v431, 4
        %v433 = vadd.f32 %v431, %v432
        %v434 = vrot.slane %v433, 2
        %v435 = vadd.f32 %v433, %v434
        %v436 = vrot.slane %v435, 1
        %v437 = vadd.f32 %v435, %v436
        %v438 = vmul.f32 %v366, %v366
        %v439 = vmul.f32 %v367, %v367
        %v440 = vmul.f32 %v368, %v368
        %v441 = vmul.f32 %v369, %v369
        %v442 = vadd.f32 %v438, %v439
        %v443 = vadd.f32 %v442, %v440
        %v444 = vadd.f32 %v443, %v441
        %v445 = vrot.slane %v444, 4
        %v446 = vadd.f32 %v444, %v445
        %v447 = vrot.slane %v446, 2
        %v448 = vadd.f32 %v446, %v447
        %v449 = vrot.slane %v448, 1
        %v450 = vadd.f32 %v448, %v449
        %v451 = vsel %vm421, 1.0, 0.0
        %v452 = vsel %vm422, 1.0, 0.0
        %v453 = vsel %vm423, 1.0, 0.0
        %v454 = vsel %vm424, 1.0, 0.0
        %v455 = vadd.f32 %v451, %v452
        %v456 = vadd.f32 %v455, %v453
        %v457 = vadd.f32 %v456, %v454
        %v458 = vrot.slane %v457, 4
        %v459 = vadd.f32 %v457, %v458
        %v460 = vrot.slane %v459, 2
        %v461 = vadd.f32 %v459, %v460
        %v462 = vrot.slane %v461, 1
        %v463 = vadd.f32 %v461, %v462
        %vm464 = vcmp.eq.s32.totalorder %v231, 2
        %vm465 = vcmp.eq.s32.totalorder %v232, 2
        %vm466 = vcmp.eq.s32.totalorder %v233, 2
        %vm467 = vcmp.eq.s32.totalorder %v234, 2
        %v468 = vsel %vm464, %v370, 0.0
        %v469 = vsel %vm465, %v371, 0.0
        %v470 = vsel %vm466, %v372, 0.0
        %v471 = vsel %vm467, %v373, 0.0
        %v472 = vadd.f32 %v468, %v469
        %v473 = vadd.f32 %v472, %v470
        %v474 = vadd.f32 %v473, %v471
        %v475 = vrot.slane %v474, 4
        %v476 = vadd.f32 %v474, %v475
        %v477 = vrot.slane %v476, 2
        %v478 = vadd.f32 %v476, %v477
        %v479 = vrot.slane %v478, 1
        %v480 = vadd.f32 %v478, %v479
        %v481 = vmul.f32 %v370, %v370
        %v482 = vmul.f32 %v371, %v371
        %v483 = vmul.f32 %v372, %v372
        %v484 = vmul.f32 %v373, %v373
        %v485 = vadd.f32 %v481, %v482
        %v486 = vadd.f32 %v485, %v483
        %v487 = vadd.f32 %v486, %v484
        %v488 = vrot.slane %v487, 4
        %v489 = vadd.f32 %v487, %v488
        %v490 = vrot.slane %v489, 2
        %v491 = vadd.f32 %v489, %v490
        %v492 = vrot.slane %v491, 1
        %v493 = vadd.f32 %v491, %v492
        %v494 = vsel %vm464, 1.0, 0.0
        %v495 = vsel %vm465, 1.0, 0.0
        %v496 = vsel %vm466, 1.0, 0.0
        %v497 = vsel %vm467, 1.0, 0.0
        %v498 = vadd.f32 %v494, %v495
        %v499 = vadd.f32 %v498, %v496
        %v500 = vadd.f32 %v499, %v497
        %v501 = vrot.slane %v500, 4
        %v502 = vadd.f32 %v500, %v501
        %v503 = vrot.slane %v502, 2
        %v504 = vadd.f32 %v502, %v503
        %v505 = vrot.slane %v504, 1
        %v506 = vadd.f32 %v504, %v505
        %vm507 = vcmp.eq.s32.totalorder %v231, 3
        %vm508 = vcmp.eq.s32.totalorder %v232, 3
        %vm509 = vcmp.eq.s32.totalorder %v233, 3
        %vm510 = vcmp.eq.s32.totalorder %v234, 3
        %v511 = vsel %vm507, %v374, 0.0
        %v512 = vsel %vm508, %v375, 0.0
        %v513 = vsel %vm509, %v376, 0.0
        %v514 = vsel %vm510, %v377, 0.0
        %v515 = vadd.f32 %v511, %v512
        %v516 = vadd.f32 %v515, %v513
        %v517 = vadd.f32 %v516, %v514
        %v518 = vrot.slane %v517, 4
        %v519 = vadd.f32 %v517, %v518
        %v520 = vrot.slane %v519, 2
        %v521 = vadd.f32 %v519, %v520
        %v522 = vrot.slane %v521, 1
        %v523 = vadd.f32 %v521, %v522
        %v524 = vmul.f32 %v374, %v374
        %v525 = vmul.f32 %v375, %v375
        %v526 = vmul.f32 %v376, %v376
        %v527 = vmul.f32 %v377, %v377
        %v528 = vadd.f32 %v524, %v525
        %v529 = vadd.f32 %v528, %v526
        %v530 = vadd.f32 %v529, %v527
        %v531 = vrot.slane %v530, 4
        %v532 = vadd.f32 %v530, %v531
        %v533 = vrot.slane %v532, 2
        %v534 = vadd.f32 %v532, %v533
        %v535 = vrot.slane %v534, 1
        %v536 = vadd.f32 %v534, %v535
        %v537 = vsel %vm507, 1.0, 0.0
        %v538 = vsel %vm508, 1.0, 0.0
        %v539 = vsel %vm509, 1.0, 0.0
        %v540 = vsel %vm510, 1.0, 0.0
        %v541 = vadd.f32 %v537, %v538
        %v542 = vadd.f32 %v541, %v539
        %v543 = vadd.f32 %v542, %v540
        %v544 = vrot.slane %v543, 4
        %v545 = vadd.f32 %v543, %v544
        %v546 = vrot.slane %v545, 2
        %v547 = vadd.f32 %v545, %v546
        %v548 = vrot.slane %v547, 1
        %v549 = vadd.f32 %v547, %v548
        %v550 = vld [vmem:[#allocation2] sm:$0xf]
        %vm551 = vcmask 1040384
        %v552 = vsel %vm551, %v394, %v437
        %vm553 = vcmask 1041408
        %v554 = vsel %vm553, %v552, %v480
        %vm555 = vcmask 1042432
        %v556 = vsel %vm555, %v554, %v523
        %v557 = vadd.f32 %v550, %v556
        %558 = vst [vmem:[#allocation2] sm:$0xf] %v557
        %v559 = vld [vmem:[#allocation3] sm:$0xf]
        %v560 = vsel %vm551, %v407, %v450
        %v561 = vsel %vm553, %v560, %v493
        %v562 = vsel %vm555, %v561, %v536
        %v563 = vadd.f32 %v559, %v562
        %564 = vst [vmem:[#allocation3] sm:$0xf] %v563
        %v565 = vld [vmem:[#allocation4] sm:$0xf]
        %v566 = vsel %vm551, %v420, %v463
        %v567 = vsel %vm553, %v566, %v506
        %v568 = vsel %vm555, %v567, %v549
        %v569 = vadd.f32 %v565, %v568
        %570 = vst [vmem:[#allocation4] sm:$0xf] %v569
        // Predicated region
        $region41: #{tpu_custom_call.1} parent=27 // pred_check
          %p571 = pneg %p224
        $region42: #{tpu_custom_call.1} parent=27 // pred_check_branch
          %573 = sbr.rel (%p571) target = $region44
        $region43: #{tpu_custom_call.1} parent=27 // pred_region
          %v574 = vld [vmem:[#allocation2] sm:$0xf]
          %vm575 = vcmask 1043456
          %v576 = vsel %vm575, %v574, 0.0
          %577 = vadd.xlane.f32.xlu0 %v576
          %v578 = vpop.xlane.xlu0 %577
          %vm579 = vcmask 3072
          %580 = vst.msk [vmem:[%s223] sm:$0xf] %vm579, %v578
          %v581 = vld [vmem:[#allocation3] sm:$0xf]
          %v582 = vsel %vm575, %v581, 0.0
          %583 = vadd.xlane.f32.xlu0 %v582
          %v584 = vpop.xlane.xlu0 %583
          %vm585 = vcmask 11272
          %586 = vst.msk [vmem:[%s223] sm:$0xf] %vm585, %v584
          %v587 = vld [vmem:[#allocation4] sm:$0xf]
          %v588 = vsel %vm575, %v587, 0.0
          %589 = vadd.xlane.f32.xlu0 %v588
          %v590 = vpop.xlane.xlu0 %589
          %vm591 = vcmask 19472
          %592 = vst.msk [vmem:[%s223] sm:$0xf] %vm591, %v590
        $region44: #{tpu_custom_call.1} parent=27 // pred_fallthru
          _
        %p593 = scmp.lt.s32.totalorder %s23, 1
        %s594 = scalar_select %p593, %s23, 1
        %s595 = smul.addr %s594, 4
        %s596 = scalar_lea.vmem %s2, %s595
        // Predicated region
        $region45: #{tpu_custom_call.1} parent=27 // pred_check
          %p597 = pneg %p105
        $region46: #{tpu_custom_call.1} parent=27 // pred_check_branch
          %599 = sbr.rel (%p597) target = $region48
        $region47: #{tpu_custom_call.1} parent=27 // pred_region
          _
        $region48: #{tpu_custom_call.1} parent=27 // pred_fallthru
          _
      $region28: #{tpu_custom_call.1} parent=5 // pred_fallthru
        _
      %p600 = scmp.le.s32.totalorder 2, %s14
      // Predicated region
      $region49: #{tpu_custom_call.1} parent=5 // pred_check
        %p601 = pneg %p600
      $region50: #{tpu_custom_call.1} parent=5 // pred_check_branch
        %603 = sbr.rel (%p601) target = $region52
      $region51: #{tpu_custom_call.1} parent=5 // pred_region
        %s604 = ssub.s32 %s14, 2
        // Predicated region
        $region53: #{tpu_custom_call.1} parent=51 // pred_check
          %p605 = pneg %p111
        $region54: #{tpu_custom_call.1} parent=51 // pred_check_branch
          %607 = sbr.rel (%p605) target = $region56
        $region55: #{tpu_custom_call.1} parent=51 // pred_region
          %p608 = scmp.lt.s32.totalorder %s25, 1
          %s609 = scalar_select %p608, %s25, 1
          %s610 = smul.addr %s609, 4
          %s611 = scalar_lea.vmem %s2, %s610
        $region56: #{tpu_custom_call.1} parent=51 // pred_fallthru
          _
      $region52: #{tpu_custom_call.1} parent=5 // pred_fallthru
        _
    $region6: #{tpu_custom_call.1} parent=1 // loop_footer
      %s18 = sadd.s32 1, %s14
    $region7: #{tpu_custom_call.1} parent=1 // loop_footer_branch
      %13 = sbr.rel target = $region3
    $region8: #{tpu_custom_call.1} parent=1 // loop_exit
      _
    %612 = vsyncpa [#allocation6], 1
    %s613 = scalar_lea.sflag [#allocation6], 1
    %614 = vsyncpa %s613, 1
    %615 = vsyncpa [#allocation8], 1
    %s616 = scalar_lea.sflag [#allocation8], 1
    %617 = vsyncpa %s616, 1

</llo_original>
